<compile_context>
chip_gen: v7x
topology: tpu7x:2x2x1
jax: 0.10.0
libtpu: 0.0.40
codegen_flags: <defaults>
</compile_context>

<pallas_src>
import functools

import jax
import jax.numpy as jnp
import numpy as np
from jax.experimental import pallas as pl
from jax.experimental.pallas import tpu as pltpu

Z_DIM = 8
HIDDEN = 128


def _round_up(x, m):
    return (x + m - 1) // m * m


def _discriminator_kernel(sae_ref, w1_ref, w2_ref, w3_ref, misc_ref, out_ref,
                          *, sa_dim, z_dim, matmul_dtype):
    sae = sae_ref[...]                            # (TB, sa_dim + z_dim)
    x = sae[:, :sa_dim]                           # lane offset 0: free
    eps = sae[:, sa_dim:sa_dim + z_dim]           # one lane-rotate (XLU slot)

    misc = misc_ref[...]                          # (8, hidden) == one f32 vreg
    b1 = misc[0:1, :]                             # (1, hidden)
    b2 = misc[1:2, :]                             # (1, hidden)
    b3 = misc[2:3, :2 * z_dim]                    # (1, 2*z_dim)
    wd = misc[3:4, :z_dim]                        # fc_d weight as a lane row
    bd = misc[4:5, 0:1]                           # (1, 1)

    # fc_z: Linear -> ReLU -> Linear -> ReLU -> Linear (merged mean|logstd).
    h1 = jnp.maximum(
        jnp.dot(x.astype(matmul_dtype), w1_ref[...],
                preferred_element_type=jnp.float32) + b1, 0.0)
    h2 = jnp.maximum(
        jnp.dot(h1.astype(matmul_dtype), w2_ref[...],
                preferred_element_type=jnp.float32) + b2, 0.0)
    ml = jnp.dot(h2.astype(matmul_dtype), w3_ref[...],
                 preferred_element_type=jnp.float32) + b3       # (TB, 2*z_dim)

    z_mean = ml[:, :z_dim]                        # lane offset 0
    z_logstd = ml[:, z_dim:]                      # multiple-of-8 lane offset

    # Reparameterization trick (eps is supplied N(0,1) noise).
    z_sample = eps * jnp.exp(z_logstd) + z_mean   # (TB, z_dim)

    # fc_d (z_dim -> 1): VPU multiply + XLU lane-reduce instead of N=1 matmul.
    logits = jnp.sum(z_sample * wd, axis=-1, keepdims=True) + bd  # (TB, 1)
    prob = pl.reciprocal(1.0 + jnp.exp(-logits), approx=True)

    # Single merged output slab: [mean | logstd | prob].
    out_ref[:, :2 * z_dim] = ml
    out_ref[:, 2 * z_dim:] = prob


def pack_params(params, *, matmul_dtype=jnp.float32):
    """One-time host-side repack of the raw params into kernel operands."""
    sa_dim, hidden = params["w1"].shape
    z_dim = params["w3"].shape[1] // 2

    # All small params packed into a single (8, hidden) f32 operand.
    misc = jnp.zeros((8, hidden), jnp.float32)
    misc = misc.at[0, :].set(params["b1"].reshape(-1))
    misc = misc.at[1, :].set(params["b2"].reshape(-1))
    misc = misc.at[2, :2 * z_dim].set(params["b3"].reshape(-1))
    misc = misc.at[3, :z_dim].set(params["wd"].reshape(-1))
    misc = misc.at[4, 0].set(params["bd"].reshape(-1)[0])

    return {
        "w1": params["w1"].astype(matmul_dtype),
        "w2": params["w2"].astype(matmul_dtype),
        "w3": params["w3"].astype(matmul_dtype),   # merged (hidden, 2*z_dim)
        "misc": misc,
        "sa_dim": sa_dim,
        "z_dim": z_dim,
        "hidden": hidden,
        "matmul_dtype": matmul_dtype,
    }


def discriminator_forward(sa, eps, packed, *, block_b=1024):
    """Returns (prob, z_mean, z_logstd) exactly like DiscriminatorNet.forward."""
    sa_dim = packed["sa_dim"]
    z_dim = packed["z_dim"]
    hidden = packed["hidden"]
    mdt = packed["matmul_dtype"]
    B = sa.shape[0]
    assert sa.shape == (B, sa_dim) and eps.shape == (B, z_dim)

    # Merged [sa | eps] input: one DMA descriptor per grid step.
    sae = jnp.concatenate(
        [sa.astype(jnp.float32), eps.astype(jnp.float32)], axis=-1)

    # Batch tile: multiple of 8 sublanes, capped at block_b.  Aim for >= 2
    # grid steps so the "parallel" batch axis shards across v7x's 2 TCs.
    TB = min(block_b, max(8, _round_up(-(-B // 2), 8)))
    B_pad = _round_up(B, TB)
    if B_pad != B:
        sae = jnp.pad(sae, ((0, B_pad - B), (0, 0)))
    grid = (B_pad // TB,)

    kernel = functools.partial(_discriminator_kernel,
                               sa_dim=sa_dim, z_dim=z_dim, matmul_dtype=mdt)

    out = pl.pallas_call(
        kernel,
        grid=grid,
        in_specs=[
            pl.BlockSpec((TB, sa_dim + z_dim), lambda i: (i, 0)),   # [sa|eps]
            pl.BlockSpec((sa_dim, hidden), lambda i: (0, 0)),       # weights:
            pl.BlockSpec((hidden, hidden), lambda i: (0, 0)),       # VMEM-
            pl.BlockSpec((hidden, 2 * z_dim), lambda i: (0, 0)),    # resident
            pl.BlockSpec((8, hidden), lambda i: (0, 0)),            # misc vreg
        ],
        out_specs=pl.BlockSpec((TB, 2 * z_dim + 1), lambda i: (i, 0)),
        out_shape=jax.ShapeDtypeStruct((B_pad, 2 * z_dim + 1), jnp.float32),
        compiler_params=pltpu.CompilerParams(
            dimension_semantics=("parallel",),
            vmem_limit_bytes=32 * 1024 * 1024,
        ),
    )(sae, packed["w1"], packed["w2"], packed["w3"], packed["misc"])

    prob = out[:B, 2 * z_dim:]
    z_mean = out[:B, :z_dim]
    z_logstd = out[:B, z_dim:2 * z_dim]
    return prob, z_mean, z_logstd


def _orthogonal(key, shape, gain):
    """Deterministic orthogonal init (matches nn.init.orthogonal_ semantics)."""
    rows, cols = shape
    n = max(rows, cols)
    a = jax.random.normal(key, (n, n), dtype=jnp.float32)
    q, r = jnp.linalg.qr(a)
    q = q * jnp.sign(jnp.diag(r))
    return gain * q[:rows, :cols]


def init_params(key, sa_dim, z_dim=Z_DIM, hidden=HIDDEN):
    gain = float(np.sqrt(2.0))  # nn.init.calculate_gain('relu')
    k1, k2, k3, k4 = jax.random.split(key, 4)
    # Weights stored (in, out); PyTorch Linear stores (out, in), so this is W^T.
    return {
        "w1": _orthogonal(k1, (sa_dim, hidden), gain),
        "b1": jnp.zeros((1, hidden), jnp.float32),
        "w2": _orthogonal(k2, (hidden, hidden), gain),
        "b2": jnp.zeros((1, hidden), jnp.float32),
        "w3": _orthogonal(k3, (hidden, 2 * z_dim), gain),
        "b3": jnp.zeros((1, 2 * z_dim), jnp.float32),
        "wd": _orthogonal(k4, (z_dim, 1), gain),
        "bd": jnp.zeros((1, 1), jnp.float32),
    }


def reference_forward(sa, eps, params):
    """Pure-JAX reference for correctness checking."""
    h = jnp.maximum(sa @ params["w1"] + params["b1"], 0.0)
    h = jnp.maximum(h @ params["w2"] + params["b2"], 0.0)
    h = h @ params["w3"] + params["b3"]
    z_dim = params["w3"].shape[1] // 2
    z_mean, z_logstd = h[:, :z_dim], h[:, z_dim:]
    z = eps * jnp.exp(z_logstd) + z_mean
    logits = z @ params["wd"] + params["bd"]
    return jax.nn.sigmoid(logits), z_mean, z_logstd


if __name__ == "__main__":
    key = jax.random.PRNGKey(0)
    k_param, k_sa, k_eps = jax.random.split(key, 3)

    B, SA_DIM = 8, 16
    params = init_params(k_param, SA_DIM, Z_DIM)
    packed = pack_params(params)

    sa = jax.random.normal(k_sa, (B, SA_DIM), dtype=jnp.float32)
    # torch.randn_like(z_std) -> deterministic N(0,1) noise generated outside the kernel.
    eps = jax.random.normal(k_eps, (B, Z_DIM), dtype=jnp.float32)

    prob, z_mean, z_logstd = discriminator_forward(sa, eps, packed)
    jax.block_until_ready((prob, z_mean, z_logstd))

    p_ref, m_ref, ls_ref = reference_forward(sa, eps, params)
    np.testing.assert_allclose(np.asarray(z_mean), np.asarray(m_ref), rtol=1e-5, atol=1e-5)
    np.testing.assert_allclose(np.asarray(z_logstd), np.asarray(ls_ref), rtol=1e-5, atol=1e-5)
    # prob uses the EUP approx reciprocal -> slightly looser tolerance.
    np.testing.assert_allclose(np.asarray(prob), np.asarray(p_ref), rtol=2e-3, atol=2e-3)
    assert prob.shape == (B, 1) and z_mean.shape == (B, Z_DIM) and z_logstd.shape == (B, Z_DIM)

    # Second call exercising grid > 1, megacore-parallel batch axis and padding.
    B2 = 40
    k_sa2, k_eps2 = jax.random.split(jax.random.PRNGKey(1), 2)
    sa2 = jax.random.normal(k_sa2, (B2, SA_DIM), dtype=jnp.float32)
    eps2 = jax.random.normal(k_eps2, (B2, Z_DIM), dtype=jnp.float32)
    prob2, m2, ls2 = discriminator_forward(sa2, eps2, packed, block_b=16)
    jax.block_until_ready((prob2, m2, ls2))
    p2_ref, m2_ref, ls2_ref = reference_forward(sa2, eps2, params)
    np.testing.assert_allclose(np.asarray(m2), np.asarray(m2_ref), rtol=1e-5, atol=1e-5)
    np.testing.assert_allclose(np.asarray(ls2), np.asarray(ls2_ref), rtol=1e-5, atol=1e-5)
    np.testing.assert_allclose(np.asarray(prob2), np.asarray(p2_ref), rtol=2e-3, atol=2e-3)

    # Optional bf16-MXU path (v6e/v7x throughput mode); loose tolerance by design.
    packed_bf16 = pack_params(params, matmul_dtype=jnp.bfloat16)
    prob3, m3, ls3 = discriminator_forward(sa2, eps2, packed_bf16, block_b=16)
    jax.block_until_ready((prob3, m3, ls3))
    np.testing.assert_allclose(np.asarray(m3), np.asarray(m2_ref), rtol=5e-2, atol=5e-2)
    np.testing.assert_allclose(np.asarray(ls3), np.asarray(ls2_ref), rtol=5e-2, atol=5e-2)
    np.testing.assert_allclose(np.asarray(prob3), np.asarray(p2_ref), rtol=5e-2, atol=5e-2)

    print("KERNEL_OK")
</pallas_src>

<mosaic_0001>
module attributes {stable_mosaic.version = 11 : i64} {
  func.func @_discriminator_kernel(%arg0: i32, %arg1: memref<8x24xf32, #tpu.memory_space<vmem>>, %arg2: memref<16x128xf32, #tpu.memory_space<vmem>>, %arg3: memref<128x128xf32, #tpu.memory_space<vmem>>, %arg4: memref<128x16xf32, #tpu.memory_space<vmem>>, %arg5: memref<8x128xf32, #tpu.memory_space<vmem>>, %arg6: memref<8x17xf32, #tpu.memory_space<vmem>>) attributes {dimension_semantics = [#tpu.dimension_semantics<parallel>], iteration_bounds = array<i64: 1>, scalar_prefetch = 0 : i64, scratch_operands = 0 : i64, tpu.core_type = #tpu.core_type<tc>, window_params = [{transform_indices = @transform_0, window_bounds = array<i64: 8, 24>}, {pipeline_mode = #tpu.pipeline_mode<synchronous>, transform_indices = @transform_1, window_bounds = array<i64: 16, 128>}, {pipeline_mode = #tpu.pipeline_mode<synchronous>, transform_indices = @transform_2, window_bounds = array<i64: 128, 128>}, {pipeline_mode = #tpu.pipeline_mode<synchronous>, transform_indices = @transform_3, window_bounds = array<i64: 128, 16>}, {pipeline_mode = #tpu.pipeline_mode<synchronous>, transform_indices = @transform_4, window_bounds = array<i64: 8, 128>}, {transform_indices = @transform_5, window_bounds = array<i64: 8, 17>}]} {
    %c0 = arith.constant 0 : index
    %c0_0 = arith.constant 0 : index
    %0 = vector.load %arg1[%c0, %c0_0] : memref<8x24xf32, #tpu.memory_space<vmem>>, vector<8x24xf32>
    %1 = vector.extract_strided_slice %0 {offsets = [0, 0], sizes = [8, 16], strides = [1, 1]} : vector<8x24xf32> to vector<8x16xf32>
    %2 = vector.extract_strided_slice %0 {offsets = [0, 16], sizes = [8, 8], strides = [1, 1]} : vector<8x24xf32> to vector<8x8xf32>
    %c0_1 = arith.constant 0 : index
    %c0_2 = arith.constant 0 : index
    %3 = vector.load %arg5[%c0_1, %c0_2] : memref<8x128xf32, #tpu.memory_space<vmem>>, vector<8x128xf32>
    %4 = vector.extract_strided_slice %3 {offsets = [0, 0], sizes = [1, 128], strides = [1, 1]} : vector<8x128xf32> to vector<1x128xf32>
    %5 = vector.extract_strided_slice %3 {offsets = [1, 0], sizes = [1, 128], strides = [1, 1]} : vector<8x128xf32> to vector<1x128xf32>
    %6 = vector.extract_strided_slice %3 {offsets = [2, 0], sizes = [1, 16], strides = [1, 1]} : vector<8x128xf32> to vector<1x16xf32>
    %7 = vector.extract_strided_slice %3 {offsets = [3, 0], sizes = [1, 8], strides = [1, 1]} : vector<8x128xf32> to vector<1x8xf32>
    %8 = vector.extract_strided_slice %3 {offsets = [4, 0], sizes = [1, 1], strides = [1, 1]} : vector<8x128xf32> to vector<1x1xf32>
    %c0_3 = arith.constant 0 : index
    %c0_4 = arith.constant 0 : index
    %9 = vector.load %arg2[%c0_3, %c0_4] : memref<16x128xf32, #tpu.memory_space<vmem>>, vector<16x128xf32>
    %cst = arith.constant dense<0.000000e+00> : vector<8x128xf32>
    %10 = tpu.matmul %1, %9, %cst {dimension_numbers = #tpu.dot_dimension_numbers<[1], [0], [0], [1], [0, 0, 1, 1], [], []>} : vector<8x16xf32>, vector<16x128xf32>, vector<8x128xf32> -> vector<8x128xf32>
    %11 = vector.broadcast %4 : vector<1x128xf32> to vector<8x128xf32>
    %12 = arith.addf %10, %11 : vector<8x128xf32>
    %cst_5 = arith.constant 0.000000e+00 : f32
    %13 = vector.broadcast %cst_5 : f32 to vector<8x128xf32>
    %14 = arith.maximumf %12, %13 : vector<8x128xf32>
    %c0_6 = arith.constant 0 : index
    %c0_7 = arith.constant 0 : index
    %15 = vector.load %arg3[%c0_6, %c0_7] : memref<128x128xf32, #tpu.memory_space<vmem>>, vector<128x128xf32>
    %cst_8 = arith.constant dense<0.000000e+00> : vector<8x128xf32>
    %16 = tpu.matmul %14, %15, %cst_8 {dimension_numbers = #tpu.dot_dimension_numbers<[1], [0], [0], [1], [0, 0, 1, 1], [], []>} : vector<8x128xf32>, vector<128x128xf32>, vector<8x128xf32> -> vector<8x128xf32>
    %17 = vector.broadcast %5 : vector<1x128xf32> to vector<8x128xf32>
    %18 = arith.addf %16, %17 : vector<8x128xf32>
    %cst_9 = arith.constant 0.000000e+00 : f32
    %19 = vector.broadcast %cst_9 : f32 to vector<8x128xf32>
    %20 = arith.maximumf %18, %19 : vector<8x128xf32>
    %c0_10 = arith.constant 0 : index
    %c0_11 = arith.constant 0 : index
    %21 = vector.load %arg4[%c0_10, %c0_11] : memref<128x16xf32, #tpu.memory_space<vmem>>, vector<128x16xf32>
    %cst_12 = arith.constant dense<0.000000e+00> : vector<8x16xf32>
    %22 = tpu.matmul %20, %21, %cst_12 {dimension_numbers = #tpu.dot_dimension_numbers<[1], [0], [0], [1], [0, 0, 1, 1], [], []>} : vector<8x128xf32>, vector<128x16xf32>, vector<8x16xf32> -> vector<8x16xf32>
    %23 = vector.broadcast %6 : vector<1x16xf32> to vector<8x16xf32>
    %24 = arith.addf %22, %23 : vector<8x16xf32>
    %25 = vector.extract_strided_slice %24 {offsets = [0, 0], sizes = [8, 8], strides = [1, 1]} : vector<8x16xf32> to vector<8x8xf32>
    %26 = vector.extract_strided_slice %24 {offsets = [0, 8], sizes = [8, 8], strides = [1, 1]} : vector<8x16xf32> to vector<8x8xf32>
    %27 = math.exp %26 : vector<8x8xf32>
    %28 = arith.mulf %2, %27 : vector<8x8xf32>
    %29 = arith.addf %28, %25 : vector<8x8xf32>
    %30 = vector.broadcast %7 : vector<1x8xf32> to vector<8x8xf32>
    %31 = arith.mulf %29, %30 : vector<8x8xf32>
    %cst_13 = arith.constant dense<0.000000e+00> : vector<8xf32>
    %32 = vector.multi_reduction <add>, %31, %cst_13 [1] : vector<8x8xf32> to vector<8xf32>
    %33 = vector.shape_cast %32 : vector<8xf32> to vector<8x1xf32>
    %34 = vector.broadcast %8 : vector<1x1xf32> to vector<8x1xf32>
    %35 = arith.addf %33, %34 : vector<8x1xf32>
    %cst_14 = arith.constant 0.000000e+00 : f32
    %36 = vector.broadcast %cst_14 : f32 to vector<8x1xf32>
    %37 = arith.subf %36, %35 : vector<8x1xf32>
    %38 = math.exp %37 : vector<8x1xf32>
    %cst_15 = arith.constant 1.000000e+00 : f32
    %39 = vector.broadcast %cst_15 : f32 to vector<8x1xf32>
    %40 = arith.addf %39, %38 : vector<8x1xf32>
    %41 = tpu.reciprocal %40 {approx = true} : vector<8x1xf32> -> vector<8x1xf32>
    %c0_16 = arith.constant 0 : index
    %c0_17 = arith.constant 0 : index
    %42 = vector.load %arg6[%c0_16, %c0_17] : memref<8x17xf32, #tpu.memory_space<vmem>>, vector<8x16xf32>
    tpu.vector_store %arg6[%c0_16, %c0_17], %24 {strides = array<i32>} : memref<8x17xf32, #tpu.memory_space<vmem>>, vector<8x16xf32>,
    %c0_18 = arith.constant 0 : index
    %c16 = arith.constant 16 : index
    %43 = vector.load %arg6[%c0_18, %c16] : memref<8x17xf32, #tpu.memory_space<vmem>>, vector<8x1xf32>
    tpu.vector_store %arg6[%c0_18, %c16], %41 {strides = array<i32>} : memref<8x17xf32, #tpu.memory_space<vmem>>, vector<8x1xf32>,
    return
  }
  func.func @transform_0(%arg0: i32) -> (i32, i32) {
    %c0_i32 = arith.constant 0 : i32
    %c0_i32_0 = arith.constant 0 : i32
    return %arg0, %c0_i32 : i32, i32
  }
  func.func @transform_1(%arg0: i32) -> (i32, i32) {
    %c0_i32 = arith.constant 0 : i32
    %c0_i32_0 = arith.constant 0 : i32
    %c0_i32_1 = arith.constant 0 : i32
    return %c0_i32, %c0_i32_0 : i32, i32
  }
  func.func @transform_2(%arg0: i32) -> (i32, i32) {
    %c0_i32 = arith.constant 0 : i32
    %c0_i32_0 = arith.constant 0 : i32
    %c0_i32_1 = arith.constant 0 : i32
    return %c0_i32, %c0_i32_0 : i32, i32
  }
  func.func @transform_3(%arg0: i32) -> (i32, i32) {
    %c0_i32 = arith.constant 0 : i32
    %c0_i32_0 = arith.constant 0 : i32
    %c0_i32_1 = arith.constant 0 : i32
    return %c0_i32, %c0_i32_0 : i32, i32
  }
  func.func @transform_4(%arg0: i32) -> (i32, i32) {
    %c0_i32 = arith.constant 0 : i32
    %c0_i32_0 = arith.constant 0 : i32
    %c0_i32_1 = arith.constant 0 : i32
    return %c0_i32, %c0_i32_0 : i32, i32
  }
  func.func @transform_5(%arg0: i32) -> (i32, i32) {
    %c0_i32 = arith.constant 0 : i32
    %c0_i32_0 = arith.constant 0 : i32
    return %arg0, %c0_i32 : i32, i32
  }
}

</mosaic_0001>

<llo_original>
// kernel: tpu_custom_call.1
$region0: #{tpu_custom_call.1}
  #allocation0 [shape = 'u32[]', space=smem, size = 0x4, offset = 0x4, fixed_abs, tag = 'smem constant byte address 0x4 - core index']
  #allocation1 [shape = 'u32[144,128]{1,0:T(1,128)}', space=vmem, size = 0x12000, scoped, tag = 'internal scratch']
  %s0 = inlined_call_operand.hbm [shape: f32[8,24], index: 0, kind: input, shape index: {}]
  %s1 = inlined_call_operand.vmem [shape: f32[16,128], index: 1, kind: input, shape index: {}]
  %s2 = inlined_call_operand.vmem [shape: f32[128,128], index: 2, kind: input, shape index: {}]
  %s3 = inlined_call_operand.vmem [shape: f32[128,16], index: 3, kind: input, shape index: {}]
  %s4 = inlined_call_operand.vmem [shape: f32[8,128], index: 4, kind: input, shape index: {}]
  %s5 = inlined_call_operand.hbm [shape: f32[8,17], index: 5, kind: output, shape index: {}]
  %s6 = sld [smem:[#allocation0]]
  $region34: #{tpu_custom_call.1} parent=0
    _
  %s8 = ssub.s32 1, %s6
  %s9 = scalar_select 0, %s8, %s6
  $region1: #{tpu_custom_call.1} parent=0
    #allocation2 [shape = 'u8[4096]{0}', space=vmem, size = 0x1000, scoped, tag = 'input window, operand 0, single buffered']
    #allocation3 [shape = 's32[1]{0}', space=sflag, size = 0x4, scoped, tag = 'scoped memory for tpu_custom_call.1']
    #allocation4 [shape = 's32[1]{0}', space=sflag, size = 0x4, scoped, tag = 'scoped memory for tpu_custom_call.1']
    #allocation5 [shape = 'u8[4096]{0}', space=vmem, size = 0x1000, scoped, tag = 'output window, operand 0, single buffered']
    %10 = vsyncpa [#allocation3], 0
    %11 = vsyncpa [#allocation4], 0
    // Predicated region
    $region2: #{tpu_custom_call.1} parent=1 // pred_check
      _
    $region3: #{tpu_custom_call.1} parent=1 // pred_check_branch
      %13 = sbr.rel (0) target = $region5
    $region4: #{tpu_custom_call.1} parent=1 // pred_region
      %s15 = ssub.s32 128, 128
      %16 = vsyncadd [#allocation3], %s15
      %s18 = sshll.u32 [#allocation2], 4
      %s19 = int_to_ptr.vmem [resolvable:$true] %s18
      %21 = dma.hbm_to_vmem [thread:$0]  %s0, 128, %s19, [#allocation3]
    $region5: #{tpu_custom_call.1} parent=1 // pred_fallthru
      _
    // Predicated region
    $region6: #{tpu_custom_call.1} parent=1 // pred_check
      _
    $region7: #{tpu_custom_call.1} parent=1 // pred_check_branch
      %23 = sbr.rel (0) target = $region9
    $region8: #{tpu_custom_call.1} parent=1 // pred_region
      _
    $region9: #{tpu_custom_call.1} parent=1 // pred_fallthru
      _
    // Predicated region
    $region10: #{tpu_custom_call.1} parent=1 // pred_check
      _
    $region11: #{tpu_custom_call.1} parent=1 // pred_check_branch
      %25 = sbr.rel (0) target = $region13
    $region12: #{tpu_custom_call.1} parent=1 // pred_region
      _
    $region13: #{tpu_custom_call.1} parent=1 // pred_fallthru
      _
    // Predicated region
    $region14: #{tpu_custom_call.1} parent=1 // pred_check
      _
    $region15: #{tpu_custom_call.1} parent=1 // pred_check_branch
      %27 = sbr.rel (0) target = $region17
    $region16: #{tpu_custom_call.1} parent=1 // pred_region
      _
    $region17: #{tpu_custom_call.1} parent=1 // pred_fallthru
      _
    // Predicated region
    $region18: #{tpu_custom_call.1} parent=1 // pred_check
      _
    $region19: #{tpu_custom_call.1} parent=1 // pred_check_branch
      %29 = sbr.rel (0) target = $region21
    $region20: #{tpu_custom_call.1} parent=1 // pred_region
      _
    $region21: #{tpu_custom_call.1} parent=1 // pred_fallthru
      _
    // Predicated region
    $region22: #{tpu_custom_call.1} parent=1 // pred_check
      _
    $region23: #{tpu_custom_call.1} parent=1 // pred_check_branch
      %31 = sbr.rel (0) target = $region25
    $region24: #{tpu_custom_call.1} parent=1 // pred_region
      %32 = dma.done [#allocation3], 128
    $region25: #{tpu_custom_call.1} parent=1 // pred_fallthru
      _
    %v33 = vld [vmem:[#allocation2] sm:$0xff]
    %v34 = vld [vmem:[%s4] sm:$0xff]
    %v35 = vld [vmem:[%s1] sm:$0xff]
    %v36 = vld [vmem:[%s1 + $0x8] sm:$0xff]
    %v37 = vlaneseq
    %v38 = vshrl.u32 %v37, 7
    %v39 = vsub.s32 0, %v38
    %v40 = vrot.slane %v34, %v39
    %vm41 = vcmask 130048
    %v43 = vsel %vm41, %v33, 0
    %45 = vmatprep.subr.mxu0 0.0
    %46 = vmatpush1.msra.mxu0 %v35
    %47 = vmatprep.subr.mxu0 0.0
    %48 = vmatpush1.msra.mxu0 %v36
    %49 = vmatprep.subr.mxu0 0.0
    %50 = vmatpush1.msra.mxu0 0.0
    %51 = vmatprep.subr.mxu0 0.0
    %52 = vmatpush1.msra.mxu0 0.0
    %53 = vmatprep.subr.mxu0 0.0
    %54 = vmatpush1.msra.mxu0 0.0
    %55 = vmatprep.subr.mxu0 0.0
    %56 = vmatpush1.msra.mxu0 0.0
    %57 = vmatprep.subr.mxu0 0.0
    %58 = vmatpush1.msra.mxu0 0.0
    %59 = vmatprep.subr.mxu0 0.0
    %60 = vmatpush1.msra.mxu0 0.0
    %61 = vmatprep.subr.mxu0 0.0
    %62 = vmatpush1.msra.mxu0 0.0
    %63 = vmatprep.subr.mxu0 0.0
    %64 = vmatpush1.msra.mxu0 0.0
    %65 = vmatprep.subr.mxu0 0.0
    %66 = vmatpush1.msra.mxu0 0.0
    %67 = vmatprep.subr.mxu0 0.0
    %68 = vmatpush1.msra.mxu0 0.0
    %69 = vmatprep.subr.mxu0 0.0
    %70 = vmatpush1.msra.mxu0 0.0
    %71 = vmatprep.subr.mxu0 0.0
    %72 = vmatpush1.msra.mxu0 0.0
    %73 = vmatprep.subr.mxu0 0.0
    %74 = vmatpush1.msra.mxu0 0.0
    %75 = vmatprep.subr.mxu0 0.0
    %76 = vmatpush1.msra.mxu0 0.0
    %77 = vmatprep.subr.mxu0 0.0
    %78 = vmatpush1.msra.mxu0 0.0
    %79 = vmatprep.subr.mxu0 0.0
    %80 = vmatpush1.msra.mxu0 0.0
    %81 = vmatprep.subr.mxu0 0.0
    %82 = vmatpush1.msra.mxu0 0.0
    %83 = vmatprep.subr.mxu0 0.0
    %84 = vmatpush1.msra.mxu0 0.0
    %85 = vmatprep.subr.mxu0 0.0
    %86 = vmatpush1.msra.mxu0 0.0
    %87 = vmatprep.subr.mxu0 0.0
    %88 = vmatpush1.msra.mxu0 0.0
    %89 = vmatprep.subr.mxu0 0.0
    %90 = vmatpush1.msra.mxu0 0.0
    %91 = vmatprep.subr.mxu0 0.0
    %92 = vmatpush1.msra.mxu0 0.0
    %93 = vmatprep.subr.mxu0 0.0
    %94 = vmatpush1.msra.mxu0 0.0
    %95 = vmatprep.subr.mxu0 0.0
    %96 = vmatpush1.msra.mxu0 0.0
    %97 = vmatprep.subr.mxu0 0.0
    %98 = vmatpush1.msra.mxu0 0.0
    %99 = vmatprep.subr.mxu0 0.0
    %100 = vmatpush1.msra.mxu0 0.0
    %101 = vmatprep.subr.mxu0 0.0
    %102 = vmatpush1.msra.mxu0 0.0
    %103 = vmatprep.subr.mxu0 0.0
    %104 = vmatpush1.msra.mxu0 0.0
    %105 = vmatprep.subr.mxu0 0.0
    %106 = vmatpush1.msra.mxu0 0.0
    %107 = vmatprep.subr.mxu0 0.0
    %108 = vmatpush1.msra.mxu0 0.0
    %109 = vmatprep.mubr.f32.mxu0 0.0
    %110 = vmatmul.mubr.f32.gmra.mrb[0].mxu0 %v43
    %v111 = vpop.f32.mrb[0].mxu0
    %v112 = vadd.f32 %v40, %v111
    %v113 = vpop.f32.mrb[0].mxu0
    %114 = vdwg.mxu0
    %v115 = vmax.f32 %v112, 0.0
    %v116 = vld [vmem:[%s2] sm:$0xff]
    %v117 = vld [vmem:[%s2 + $0x8] sm:$0xff]
    %v118 = vld [vmem:[%s2 + $0x10] sm:$0xff]
    %v119 = vld [vmem:[%s2 + $0x18] sm:$0xff]
    %v120 = vld [vmem:[%s2 + $0x20] sm:$0xff]
    %v121 = vld [vmem:[%s2 + $0x28] sm:$0xff]
    %v122 = vld [vmem:[%s2 + $0x30] sm:$0xff]
    %v123 = vld [vmem:[%s2 + $0x38] sm:$0xff]
    %v124 = vld [vmem:[%s2 + $0x40] sm:$0xff]
    %v125 = vld [vmem:[%s2 + $0x48] sm:$0xff]
    %v126 = vld [vmem:[%s2 + $0x50] sm:$0xff]
    %v127 = vld [vmem:[%s2 + $0x58] sm:$0xff]
    %v128 = vld [vmem:[%s2 + $0x60] sm:$0xff]
    %v129 = vld [vmem:[%s2 + $0x68] sm:$0xff]
    %v130 = vld [vmem:[%s2 + $0x70] sm:$0xff]
    %v131 = vld [vmem:[%s2 + $0x78] sm:$0xff]
    %v132 = vlaneseq
    %v133 = vshrl.u32 %v132, 7
    %v134 = vsub.s32 1, %v133
    %v135 = vrot.slane %v34, %v134
    %136 = vmatprep.subr.mxu0 0.0
    %137 = vmatpush1.msra.mxu0 %v116
    %138 = vmatprep.subr.mxu0 0.0
    %139 = vmatpush1.msra.mxu0 %v117
    %140 = vmatprep.subr.mxu0 0.0
    %141 = vmatpush1.msra.mxu0 %v118
    %142 = vmatprep.subr.mxu0 0.0
    %143 = vmatpush1.msra.mxu0 %v119
    %144 = vmatprep.subr.mxu0 0.0
    %145 = vmatpush1.msra.mxu0 %v120
    %146 = vmatprep.subr.mxu0 0.0
    %147 = vmatpush1.msra.mxu0 %v121
    %148 = vmatprep.subr.mxu0 0.0
    %149 = vmatpush1.msra.mxu0 %v122
    %150 = vmatprep.subr.mxu0 0.0
    %151 = vmatpush1.msra.mxu0 %v123
    %152 = vmatprep.subr.mxu0 0.0
    %153 = vmatpush1.msra.mxu0 %v124
    %154 = vmatprep.subr.mxu0 0.0
    %155 = vmatpush1.msra.mxu0 %v125
    %156 = vmatprep.subr.mxu0 0.0
    %157 = vmatpush1.msra.mxu0 %v126
    %158 = vmatprep.subr.mxu0 0.0
    %159 = vmatpush1.msra.mxu0 %v127
    %160 = vmatprep.subr.mxu0 0.0
    %161 = vmatpush1.msra.mxu0 %v128
    %162 = vmatprep.subr.mxu0 0.0
    %163 = vmatpush1.msra.mxu0 %v129
    %164 = vmatprep.subr.mxu0 0.0
    %165 = vmatpush1.msra.mxu0 %v130
    %166 = vmatprep.subr.mxu0 0.0
    %167 = vmatpush1.msra.mxu0 %v131
    %168 = vmatprep.subr.mxu0 0.0
    %169 = vmatpush1.msra.mxu0 0.0
    %170 = vmatprep.subr.mxu0 0.0
    %171 = vmatpush1.msra.mxu0 0.0
    %172 = vmatprep.subr.mxu0 0.0
    %173 = vmatpush1.msra.mxu0 0.0
    %174 = vmatprep.subr.mxu0 0.0
    %175 = vmatpush1.msra.mxu0 0.0
    %176 = vmatprep.subr.mxu0 0.0
    %177 = vmatpush1.msra.mxu0 0.0
    %178 = vmatprep.subr.mxu0 0.0
    %179 = vmatpush1.msra.mxu0 0.0
    %180 = vmatprep.subr.mxu0 0.0
    %181 = vmatpush1.msra.mxu0 0.0
    %182 = vmatprep.subr.mxu0 0.0
    %183 = vmatpush1.msra.mxu0 0.0
    %184 = vmatprep.subr.mxu0 0.0
    %185 = vmatpush1.msra.mxu0 0.0
    %186 = vmatprep.subr.mxu0 0.0
    %187 = vmatpush1.msra.mxu0 0.0
    %188 = vmatprep.subr.mxu0 0.0
    %189 = vmatpush1.msra.mxu0 0.0
    %190 = vmatprep.subr.mxu0 0.0
    %191 = vmatpush1.msra.mxu0 0.0
    %192 = vmatprep.subr.mxu0 0.0
    %193 = vmatpush1.msra.mxu0 0.0
    %194 = vmatprep.subr.mxu0 0.0
    %195 = vmatpush1.msra.mxu0 0.0
    %196 = vmatprep.subr.mxu0 0.0
    %197 = vmatpush1.msra.mxu0 0.0
    %198 = vmatprep.subr.mxu0 0.0
    %199 = vmatpush1.msra.mxu0 0.0
    %200 = vmatprep.mubr.f32.mxu0 0.0
    %201 = vmatmul.mubr.f32.gmra.mrb[0].mxu0 %v115
    %v202 = vpop.f32.mrb[0].mxu0
    %v203 = vadd.f32 %v135, %v202
    %v204 = vpop.f32.mrb[0].mxu0
    %205 = vdwg.mxu0
    %v206 = vmax.f32 %v203, 0.0
    %v207 = vld [vmem:[%s3] sm:$0xff]
    %v208 = vld [vmem:[%s3 + $0x8] sm:$0xff]
    %v209 = vld [vmem:[%s3 + $0x10] sm:$0xff]
    %v210 = vld [vmem:[%s3 + $0x18] sm:$0xff]
    %v211 = vld [vmem:[%s3 + $0x20] sm:$0xff]
    %v212 = vld [vmem:[%s3 + $0x28] sm:$0xff]
    %v213 = vld [vmem:[%s3 + $0x30] sm:$0xff]
    %v214 = vld [vmem:[%s3 + $0x38] sm:$0xff]
    %v215 = vld [vmem:[%s3 + $0x40] sm:$0xff]
    %v216 = vld [vmem:[%s3 + $0x48] sm:$0xff]
    %v217 = vld [vmem:[%s3 + $0x50] sm:$0xff]
    %v218 = vld [vmem:[%s3 + $0x58] sm:$0xff]
    %v219 = vld [vmem:[%s3 + $0x60] sm:$0xff]
    %v220 = vld [vmem:[%s3 + $0x68] sm:$0xff]
    %v221 = vld [vmem:[%s3 + $0x70] sm:$0xff]
    %v222 = vld [vmem:[%s3 + $0x78] sm:$0xff]
    %v223 = vlaneseq
    %v224 = vshrl.u32 %v223, 7
    %v225 = vsub.s32 2, %v224
    %v226 = vrot.slane %v34, %v225
    %227 = vmatprep.subr.mxu0 0.0
    %228 = vmatpush1.msra.mxu0 %v207
    %229 = vmatprep.subr.mxu0 0.0
    %230 = vmatpush1.msra.mxu0 %v208
    %231 = vmatprep.subr.mxu0 0.0
    %232 = vmatpush1.msra.mxu0 %v209
    %233 = vmatprep.subr.mxu0 0.0
    %234 = vmatpush1.msra.mxu0 %v210
    %235 = vmatprep.subr.mxu0 0.0
    %236 = vmatpush1.msra.mxu0 %v211
    %237 = vmatprep.subr.mxu0 0.0
    %238 = vmatpush1.msra.mxu0 %v212
    %239 = vmatprep.subr.mxu0 0.0
    %240 = vmatpush1.msra.mxu0 %v213
    %241 = vmatprep.subr.mxu0 0.0
    %242 = vmatpush1.msra.mxu0 %v214
    %243 = vmatprep.subr.mxu0 0.0
    %244 = vmatpush1.msra.mxu0 %v215
    %245 = vmatprep.subr.mxu0 0.0
    %246 = vmatpush1.msra.mxu0 %v216
    %247 = vmatprep.subr.mxu0 0.0
    %248 = vmatpush1.msra.mxu0 %v217
    %249 = vmatprep.subr.mxu0 0.0
    %250 = vmatpush1.msra.mxu0 %v218
    %251 = vmatprep.subr.mxu0 0.0
    %252 = vmatpush1.msra.mxu0 %v219
    %253 = vmatprep.subr.mxu0 0.0
    %254 = vmatpush1.msra.mxu0 %v220
    %255 = vmatprep.subr.mxu0 0.0
    %256 = vmatpush1.msra.mxu0 %v221
    %257 = vmatprep.subr.mxu0 0.0
    %258 = vmatpush1.msra.mxu0 %v222
    %259 = vmatprep.subr.mxu0 0.0
    %260 = vmatpush1.msra.mxu0 0.0
    %261 = vmatprep.subr.mxu0 0.0
    %262 = vmatpush1.msra.mxu0 0.0
    %263 = vmatprep.subr.mxu0 0.0
    %264 = vmatpush1.msra.mxu0 0.0
    %265 = vmatprep.subr.mxu0 0.0
    %266 = vmatpush1.msra.mxu0 0.0
    %267 = vmatprep.subr.mxu0 0.0
    %268 = vmatpush1.msra.mxu0 0.0
    %269 = vmatprep.subr.mxu0 0.0
    %270 = vmatpush1.msra.mxu0 0.0
    %271 = vmatprep.subr.mxu0 0.0
    %272 = vmatpush1.msra.mxu0 0.0
    %273 = vmatprep.subr.mxu0 0.0
    %274 = vmatpush1.msra.mxu0 0.0
    %275 = vmatprep.subr.mxu0 0.0
    %276 = vmatpush1.msra.mxu0 0.0
    %277 = vmatprep.subr.mxu0 0.0
    %278 = vmatpush1.msra.mxu0 0.0
    %279 = vmatprep.subr.mxu0 0.0
    %280 = vmatpush1.msra.mxu0 0.0
    %281 = vmatprep.subr.mxu0 0.0
    %282 = vmatpush1.msra.mxu0 0.0
    %283 = vmatprep.subr.mxu0 0.0
    %284 = vmatpush1.msra.mxu0 0.0
    %285 = vmatprep.subr.mxu0 0.0
    %286 = vmatpush1.msra.mxu0 0.0
    %287 = vmatprep.subr.mxu0 0.0
    %288 = vmatpush1.msra.mxu0 0.0
    %289 = vmatprep.subr.mxu0 0.0
    %290 = vmatpush1.msra.mxu0 0.0
    %291 = vmatprep.mubr.f32.mxu0 0.0
    %292 = vmatmul.mubr.f32.gmra.mrb[0].mxu0 %v206
    %v293 = vpop.f32.mrb[0].mxu0
    %v294 = vadd.f32 %v226, %v293
    %v295 = vpop.f32.mrb[0].mxu0
    %296 = vdwg.mxu0
    %v297 = vmul.f32 %v294, 1.442695
    %v298 = vpow.pop %v297
    %300 = vrot.lane.b32.xlu0 %v298, 8
    %v301 = vpop.permute.xlu0 %300
    %v303 = vmul.f32 %v33, %v301
    %305 = vrot.lane.b32.xlu0 %v294, 16
    %v306 = vpop.permute.xlu0 %305
    %v308 = vadd.f32 %v303, %v306
    %v309 = vlaneseq
    %v310 = vshrl.u32 %v309, 7
    %v311 = vsub.s32 3, %v310
    %v312 = vrot.slane %v34, %v311
    %314 = vrot.lane.b32.xlu0 %v312, 16
    %v315 = vpop.permute.xlu0 %314
    %v317 = vmul.f32 %v308, %v315
    %319 = vrot.lane.b32.xlu0 %v317, 112
    %v320 = vpop.permute.xlu0 %319
    %vm322 = vcmask 64512
    %v323 = vsel %vm322, %v320, 0.0
    %324 = vadd.xlane.f32.xlu0 %v323
    %v325 = vpop.xlane.xlu0 %324
    %v326 = vlaneseq
    %v327 = vshrl.u32 %v326, 7
    %v328 = vsub.s32 4, %v327
    %v329 = vrot.slane %v34, %v328
    %v330 = vadd.f32 %v325, %v329
    %v331 = vsub.f32 0.0, %v330
    %v332 = vmul.f32 %v331, 1.442695
    %v333 = vpow.pop %v332
    %v334 = vadd.f32 %v333, 1.0
    %v335 = vrcp.pop %v334
    %336 = vst.msk [vmem:[#allocation5] sm:$0xff] %vm41, %v294
    %338 = vrot.lane.b32.xlu0 %v335, 16
    %v339 = vpop.permute.xlu0 %338
    %vm341 = vcmask 138368
    %342 = vst.msk [vmem:[#allocation5] sm:$0xff] %vm341, %v339
    // Predicated region
    $region26: #{tpu_custom_call.1} parent=1 // pred_check
      _
    $region27: #{tpu_custom_call.1} parent=1 // pred_check_branch
      %344 = sbr.rel (0) target = $region29
    $region28: #{tpu_custom_call.1} parent=1 // pred_region
      %s346 = ssub.s32 128, 128
      %347 = vsyncadd [#allocation4], %s346
      %s349 = sshll.u32 [#allocation5], 4
      %s350 = int_to_ptr.vmem [resolvable:$true] %s349
      %352 = dma.vmem_to_hbm [thread:$0]  %s350, 128, %s5, [#allocation4]
    $region29: #{tpu_custom_call.1} parent=1 // pred_fallthru
      _
    // Predicated region
    $region30: #{tpu_custom_call.1} parent=1 // pred_check
      _
    $region31: #{tpu_custom_call.1} parent=1 // pred_check_branch
      %354 = sbr.rel (0) target = $region33
    $region32: #{tpu_custom_call.1} parent=1 // pred_region
      %355 = dma.done [#allocation4], 128
    $region33: #{tpu_custom_call.1} parent=1 // pred_fallthru
      _
    %356 = vsyncpa [#allocation3], 1
    %357 = vsyncpa [#allocation4], 1

</llo_original>
